<compile_context>
chip_gen: v5e
topology: v5e:2x2
jax: 0.10.0
libtpu: 0.0.40
codegen_flags: <defaults>
</compile_context>

<pallas_src>
import jax
import jax.numpy as jnp
from jax.experimental import pallas as pl
from jax.experimental.pallas import tpu as pltpu


# ----------------------------- configuration --------------------------------
IN_CHANNELS = 4
IMG_SIZE = (12, 12)        # 2D spatial dims
PATCH_SIZE = (2, 2)
HIDDEN_SIZE = 32           # cls_token in the module is (1, 1, 32) -> hidden must be 32
N_PATCHES = (IMG_SIZE[0] // PATCH_SIZE[0]) * (IMG_SIZE[1] // PATCH_SIZE[1])  # 36
SEQ_LEN = N_PATCHES + 1    # 37 -> uses position_embeddings_8 branch of forward()
PATCH_DIM = IN_CHANNELS * PATCH_SIZE[0] * PATCH_SIZE[1]  # 16
BATCH = 2
DROPOUT_RATE = 0.0         # default; dropout with p=0 is identity (eval semantics)

LANES = 128
SEQ_PAD = 40                                   # 37 tokens padded to a sublane multiple
PACK = LANES // HIDDEN_SIZE                    # 4 token rows packed per 128-lane row
PACKED_K = PACK * PATCH_DIM                    # 64
PACKED_ROWS = BATCH * SEQ_PAD // PACK          # 20  (SEQ_PAD divisible by PACK)


# ------------------------------- Pallas kernel -------------------------------
def patch_embed_kernel(patches_ref, w4_ref, pos_ref, out_ref):
    # patches_ref: (PACKED_ROWS, PACKED_K)  = (20, 64)   4 token rows per packed row,
    #              token row 0 of each batch is zeros (cls slot), rows 37..39 zero pad
    # w4_ref:      (PACKED_K, LANES)        = (64, 128)  block-diag replicated conv weight
    # pos_ref:     (PACKED_ROWS, LANES)     = (20, 128)  packed (cls+pos / pos+bias), batch-tiled
    # out_ref:     (PACKED_ROWS, LANES)     = (20, 128)  lane-dense embedding slab
    emb = jnp.dot(patches_ref[...], w4_ref[...],
                  preferred_element_type=jnp.float32)
    out_ref[...] = (emb + pos_ref[...]).astype(out_ref.dtype)


@jax.jit
def patch_embedding_block(x, conv_w, conv_b, cls_token, pos_embed):
    """x: (B, C, H, W) float32.  Returns (B, SEQ_LEN, HIDDEN_SIZE) float32."""
    B, C, H, W = x.shape
    ph, pw = PATCH_SIZE

    # ---- glue (fused under jit): extract non-overlapping patches ----
    # matches conv with kernel == stride == patch_size; per-patch order = (c, ph, pw)
    patches = x.reshape(B, C, H // ph, ph, W // pw, pw)
    patches = patches.transpose(0, 2, 4, 1, 3, 5)          # (B, H/ph, W/pw, C, ph, pw)
    patches = patches.reshape(B, N_PATCHES, PATCH_DIM)     # (B, 36, 16)

    # Prepend a zero "patch" row (cls slot -> 0 @ w = 0) and pad seq 37 -> 40,
    # then pack PACK token rows per 128-lane row: (B*SEQ_PAD, 16) -> (20, 64).
    patches_pad = jnp.pad(patches, ((0, 0), (1, SEQ_PAD - SEQ_LEN), (0, 0)))
    patches_packed = patches_pad.reshape(PACKED_ROWS, PACKED_K)

    # conv_w: (HIDDEN, C, ph, pw) -> (PATCH_DIM, HIDDEN), then replicate block-diagonally
    # so the packed matmul equals PACK independent (16,)@(16,32) products per row.
    w = conv_w.reshape(HIDDEN_SIZE, PATCH_DIM).T            # (16, 32)
    w4 = jnp.kron(jnp.eye(PACK, dtype=w.dtype), w)          # (64, 128)

    # Fold cls_token, conv bias, and positional embedding into one additive term:
    #   row 0:     cls + pos[0]     (matmul contributes 0)
    #   rows 1..N: pos[i] + bias
    #   pad rows:  0                (sliced off below)
    pos = pos_embed.reshape(SEQ_LEN, HIDDEN_SIZE)
    cls = cls_token.reshape(1, HIDDEN_SIZE)
    b = conv_b.reshape(1, HIDDEN_SIZE)
    pos_plus = jnp.concatenate(
        [cls + pos[0:1, :], pos[1:, :] + b,
         jnp.zeros((SEQ_PAD - SEQ_LEN, HIDDEN_SIZE), dtype=pos.dtype)], axis=0)  # (40, 32)
    pos_packed = jnp.tile(pos_plus, (B, 1)).reshape(PACKED_ROWS, LANES)          # (20, 128)

    # Single kernel invocation: no grid, operands (<40 KB total) resident in VMEM,
    # one (20,64)@(64,128) matmul, one full-width lane-dense store.
    out_packed = pl.pallas_call(
        patch_embed_kernel,
        out_shape=jax.ShapeDtypeStruct((PACKED_ROWS, LANES), jnp.float32),
        in_specs=[
            pl.BlockSpec(memory_space=pltpu.MemorySpace.VMEM),
            pl.BlockSpec(memory_space=pltpu.MemorySpace.VMEM),
            pl.BlockSpec(memory_space=pltpu.MemorySpace.VMEM),
        ],
        out_specs=pl.BlockSpec(memory_space=pltpu.MemorySpace.VMEM),
    )(patches_packed, w4, pos_packed)

    # Unpack (20,128) -> (B, SEQ_PAD, HIDDEN) and drop the pad tokens.
    out = out_packed.reshape(B, SEQ_PAD, HIDDEN_SIZE)[:, :SEQ_LEN, :]
    return out


# ------------------------------ reference (JAX) ------------------------------
def reference(x, conv_w, conv_b, cls_token, pos_embed):
    B, C, H, W = x.shape
    ph, pw = PATCH_SIZE
    patches = x.reshape(B, C, H // ph, ph, W // pw, pw)
    patches = patches.transpose(0, 2, 4, 1, 3, 5).reshape(B, N_PATCHES, PATCH_DIM)
    w = conv_w.reshape(HIDDEN_SIZE, PATCH_DIM).T
    emb = patches @ w + conv_b[None, None, :]
    cls = jnp.broadcast_to(cls_token.reshape(1, 1, HIDDEN_SIZE), (B, 1, HIDDEN_SIZE))
    seq = jnp.concatenate([cls, emb], axis=1)
    return seq + pos_embed.reshape(1, SEQ_LEN, HIDDEN_SIZE)


# ---------------------------------- main -------------------------------------
if __name__ == "__main__":
    key = jax.random.PRNGKey(0)
    k_x, k_w, k_pos = jax.random.split(key, 3)

    # deterministic "parameters" (synthetic init, no checkpoint load)
    x = jax.random.normal(k_x, (BATCH, IN_CHANNELS, IMG_SIZE[0], IMG_SIZE[1]),
                          dtype=jnp.float32)
    # conv weight: trunc normal std=0.02 (deterministic synthetic init)
    conv_w = 0.02 * jax.random.truncated_normal(
        k_w, -2.0, 2.0, (HIDDEN_SIZE, IN_CHANNELS, PATCH_SIZE[0], PATCH_SIZE[1]),
        dtype=jnp.float32)
    conv_b = jnp.zeros((HIDDEN_SIZE,), dtype=jnp.float32)
    # position_embeddings_8: trunc normal std=0.02; cls_token stays zero (as in module)
    pos_embed = 0.02 * jax.random.truncated_normal(
        k_pos, -2.0, 2.0, (1, SEQ_LEN, HIDDEN_SIZE), dtype=jnp.float32)
    cls_token = jnp.zeros((1, 1, HIDDEN_SIZE), dtype=jnp.float32)

    out = patch_embedding_block(x, conv_w, conv_b, cls_token, pos_embed)
    out = jax.block_until_ready(out)

    ref = reference(x, conv_w, conv_b, cls_token, pos_embed)
    assert out.shape == (BATCH, SEQ_LEN, HIDDEN_SIZE), out.shape
    assert jnp.allclose(out, ref, atol=1e-5, rtol=1e-5), "mismatch vs reference"

    print("KERNEL_OK")
</pallas_src>

<mosaic_0001>
module attributes {stable_mosaic.version = 11 : i64} {
  func.func @patch_embed_kernel(%arg0: memref<20x64xf32, #tpu.memory_space<vmem>>, %arg1: memref<64x128xf32, #tpu.memory_space<vmem>>, %arg2: memref<20x128xf32, #tpu.memory_space<vmem>>, %arg3: memref<20x128xf32, #tpu.memory_space<vmem>>) attributes {dimension_semantics = [], scalar_prefetch = 0 : i64, scratch_operands = 0 : i64, tpu.core_type = #tpu.core_type<tc>} {
    %c0 = arith.constant 0 : index
    %c0_0 = arith.constant 0 : index
    %0 = vector.load %arg0[%c0, %c0_0] : memref<20x64xf32, #tpu.memory_space<vmem>>, vector<20x64xf32>
    %c0_1 = arith.constant 0 : index
    %c0_2 = arith.constant 0 : index
    %1 = vector.load %arg1[%c0_1, %c0_2] : memref<64x128xf32, #tpu.memory_space<vmem>>, vector<64x128xf32>
    %cst = arith.constant dense<0.000000e+00> : vector<20x128xf32>
    %2 = tpu.matmul %0, %1, %cst {dimension_numbers = #tpu.dot_dimension_numbers<[1], [0], [0], [1], [0, 0, 1, 1], [], []>} : vector<20x64xf32>, vector<64x128xf32>, vector<20x128xf32> -> vector<20x128xf32>
    %c0_3 = arith.constant 0 : index
    %c0_4 = arith.constant 0 : index
    %3 = vector.load %arg2[%c0_3, %c0_4] : memref<20x128xf32, #tpu.memory_space<vmem>>, vector<20x128xf32>
    %4 = arith.addf %2, %3 : vector<20x128xf32>
    %c0_5 = arith.constant 0 : index
    %c0_6 = arith.constant 0 : index
    %5 = vector.load %arg3[%c0_5, %c0_6] : memref<20x128xf32, #tpu.memory_space<vmem>>, vector<20x128xf32>
    tpu.vector_store %arg3[%c0_5, %c0_6], %4 {strides = array<i32>} : memref<20x128xf32, #tpu.memory_space<vmem>>, vector<20x128xf32>,
    return
  }
}

</mosaic_0001>

<llo_original>
// kernel: tile.8
$region0: #{tile.8}
  #allocation0 [shape = 's32[1]{0}', space=sflag, size = 0x4, scoped, tag = 'scoped memory for tile.8']
  %s0 = inlined_call_operand.vmem [shape: f32[40,32], index: 0, kind: input, shape index: {}]
  %s1 = inlined_call_operand.vmem [shape: f32[2,40,1,32], index: 1, kind: output, shape index: {}]
  // Predicated region
  $region2: #{tile.8} parent=0 // pred_check
    _
  $region3: #{tile.8} parent=0 // pred_check_branch
    %3 = sbr.rel (0) target = $region5
  $region4: #{tile.8} parent=0 // pred_region
    _
  $region5: #{tile.8} parent=0 // pred_fallthru
    _
  %v4 = vld [vmem:[%s0] sm:$0xff]
  %5 = vst [vmem:[%s1] sm:$0xff] %v4
  %s6 = scalar_lea.vmem %s1, 40
  %7 = vst [vmem:[%s6] sm:$0xff] %v4
  %s8 = scalar_lea.vmem %s0, 8
  %v9 = vld [vmem:[%s8] sm:$0xff]
  %s10 = scalar_lea.vmem %s1, 8
  %11 = vst [vmem:[%s10] sm:$0xff] %v9
  %s12 = scalar_lea.vmem %s1, 48
  %13 = vst [vmem:[%s12] sm:$0xff] %v9
  %s14 = scalar_lea.vmem %s0, 16
  %v15 = vld [vmem:[%s14] sm:$0xff]
  %s16 = scalar_lea.vmem %s1, 16
  %17 = vst [vmem:[%s16] sm:$0xff] %v15
  %s18 = scalar_lea.vmem %s1, 56
  %19 = vst [vmem:[%s18] sm:$0xff] %v15
  %s20 = scalar_lea.vmem %s0, 24
  %v21 = vld [vmem:[%s20] sm:$0xff]
  %s22 = scalar_lea.vmem %s1, 24
  %23 = vst [vmem:[%s22] sm:$0xff] %v21
  %s24 = scalar_lea.vmem %s1, 64
  %25 = vst [vmem:[%s24] sm:$0xff] %v21
  %s26 = scalar_lea.vmem %s0, 32
  %v27 = vld [vmem:[%s26] sm:$0xff]
  %s28 = scalar_lea.vmem %s1, 32
  %29 = vst [vmem:[%s28] sm:$0xff] %v27
  %s30 = scalar_lea.vmem %s1, 72
  %31 = vst [vmem:[%s30] sm:$0xff] %v27

// kernel: tile.9
$region0: #{tile.9}
  %s0 = inlined_call_operand.vmem [shape: f32[2,40,1,32], index: 0, kind: input, shape index: {}]
  %s1 = inlined_call_operand.vmem [shape: f32[20,128], index: 1, kind: output, shape index: {}]
  %v2 = vld [vmem:[%s0] ss:$4 sm:$0xff]
  %vm3 = vcmask 261120
  %4 = vst.msk [vmem:[%s1] sm:$0xff] %vm3, %v2
  %s5 = scalar_lea.vmem %s0, 32
  %v6 = vld [vmem:[%s5] ss:$4 sm:$0xff]
  %vm7 = vcmask 261120
  %s8 = scalar_lea.vmem %s1, 8
  %9 = vst.msk [vmem:[%s8] sm:$0xff] %vm7, %v6
  %s10 = scalar_lea.vmem %s0, 64
  %v11 = vld [vmem:[%s10] ss:$4 sm:$0xf]
  %vm12 = vcmask 261120
  %s13 = scalar_lea.vmem %s1, 16
  %14 = vst.msk [vmem:[%s13] sm:$0xf] %vm12, %v11
  %s15 = scalar_lea.vmem %s0, 3
  %v16 = vld [vmem:[%s15] ss:$4 sm:$0xff]
  %17 = vrot.lane.b32.xlu0 %v16, 96
  %v18 = vpop.permute.xlu0 %17
  %vm19 = vcmask 1048320
  %20 = vst.msk [vmem:[%s1] sm:$0xff] %vm19, %v18
  %s21 = scalar_lea.vmem %s0, 35
  %v22 = vld [vmem:[%s21] ss:$4 sm:$0xff]
  %23 = vrot.lane.b32.xlu0 %v22, 96
  %v24 = vpop.permute.xlu0 %23
  %vm25 = vcmask 1048320
  %s26 = scalar_lea.vmem %s1, 8
  %27 = vst.msk [vmem:[%s26] sm:$0xff] %vm25, %v24
  %s28 = scalar_lea.vmem %s0, 67
  %v29 = vld [vmem:[%s28] ss:$4 sm:$0xf]
  %30 = vrot.lane.b32.xlu0 %v29, 96
  %v31 = vpop.permute.xlu0 %30
  %vm32 = vcmask 1048320
  %s33 = scalar_lea.vmem %s1, 16
  %34 = vst.msk [vmem:[%s33] sm:$0xf] %vm32, %v31
  %s35 = scalar_lea.vmem %s0, 2
  %v36 = vld [vmem:[%s35] ss:$4 sm:$0xff]
  %37 = vrot.lane.b32.xlu0 %v36, 64
  %v38 = vpop.permute.xlu0 %37
  %vm39 = vcmask 785920
  %40 = vst.msk [vmem:[%s1] sm:$0xff] %vm39, %v38
  %s41 = scalar_lea.vmem %s0, 34
  %v42 = vld [vmem:[%s41] ss:$4 sm:$0xff]
  %43 = vrot.lane.b32.xlu0 %v42, 64
  %v44 = vpop.permute.xlu0 %43
  %vm45 = vcmask 785920
  %s46 = scalar_lea.vmem %s1, 8
  %47 = vst.msk [vmem:[%s46] sm:$0xff] %vm45, %v44
  %s48 = scalar_lea.vmem %s0, 66
  %v49 = vld [vmem:[%s48] ss:$4 sm:$0xf]
  %50 = vrot.lane.b32.xlu0 %v49, 64
  %v51 = vpop.permute.xlu0 %50
  %vm52 = vcmask 785920
  %s53 = scalar_lea.vmem %s1, 16
  %54 = vst.msk [vmem:[%s53] sm:$0xf] %vm52, %v51
  %s55 = scalar_lea.vmem %s0, 1
  %v56 = vld [vmem:[%s55] ss:$4 sm:$0xff]
  %57 = vrot.lane.b32.xlu0 %v56, 32
  %v58 = vpop.permute.xlu0 %57
  %vm59 = vcmask 523520
  %60 = vst.msk [vmem:[%s1] sm:$0xff] %vm59, %v58
  %s61 = scalar_lea.vmem %s0, 33
  %v62 = vld [vmem:[%s61] ss:$4 sm:$0xff]
  %63 = vrot.lane.b32.xlu0 %v62, 32
  %v64 = vpop.permute.xlu0 %63
  %vm65 = vcmask 523520
  %s66 = scalar_lea.vmem %s1, 8
  %67 = vst.msk [vmem:[%s66] sm:$0xff] %vm65, %v64
  %s68 = scalar_lea.vmem %s0, 65
  %v69 = vld [vmem:[%s68] ss:$4 sm:$0xf]
  %70 = vrot.lane.b32.xlu0 %v69, 32
  %v71 = vpop.permute.xlu0 %70
  %vm72 = vcmask 523520
  %s73 = scalar_lea.vmem %s1, 16
  %74 = vst.msk [vmem:[%s73] sm:$0xf] %vm72, %v71

// kernel: patch_embedding_block.1
$region0: #{patch_embedding_block.1}
  #allocation0 [shape = 'u32[]', space=smem, size = 0x4, offset = 0x4, fixed_abs, tag = 'smem constant byte address 0x4 - core index']
  #allocation1 [shape = 'u32[72,128]{1,0:T(1,128)}', space=vmem, size = 0x9000, scoped, tag = 'internal scratch']
  %s0 = inlined_call_operand.vmem [shape: f32[20,64], index: 0, kind: input, shape index: {}]
  %s1 = inlined_call_operand.vmem [shape: f32[64,128], index: 1, kind: input, shape index: {}]
  %s2 = inlined_call_operand.vmem [shape: f32[20,128], index: 2, kind: input, shape index: {}]
  %s3 = inlined_call_operand.vmem [shape: f32[20,128], index: 3, kind: output, shape index: {}]
  %s4 = sld [smem:[#allocation0]]
  $region22: #{patch_embedding_block.1} parent=0
    _
  %s6 = ssub.s32 1, %s4
  %s7 = scalar_select 0, %s6, %s4
  // Predicated region
  $region2: #{patch_embedding_block.1} parent=0 // pred_check
    _
  $region3: #{patch_embedding_block.1} parent=0 // pred_check_branch
    %9 = sbr.rel (0) target = $region5
  $region4: #{patch_embedding_block.1} parent=0 // pred_region
    _
  $region5: #{patch_embedding_block.1} parent=0 // pred_fallthru
    _
  // Predicated region
  $region6: #{patch_embedding_block.1} parent=0 // pred_check
    _
  $region7: #{patch_embedding_block.1} parent=0 // pred_check_branch
    %11 = sbr.rel (0) target = $region9
  $region8: #{patch_embedding_block.1} parent=0 // pred_region
    _
  $region9: #{patch_embedding_block.1} parent=0 // pred_fallthru
    _
  // Predicated region
  $region10: #{patch_embedding_block.1} parent=0 // pred_check
    _
  $region11: #{patch_embedding_block.1} parent=0 // pred_check_branch
    %13 = sbr.rel (0) target = $region13
  $region12: #{patch_embedding_block.1} parent=0 // pred_region
    _
  $region13: #{patch_embedding_block.1} parent=0 // pred_fallthru
    _
  %v14 = vld [vmem:[%s0] sm:$0xff]
  %v15 = vld [vmem:[%s0 + $0x8] sm:$0xff]
  %v16 = vld [vmem:[%s0 + $0x10] sm:$0xf]
  %v17 = vld [vmem:[%s1] sm:$0xff]
  %v18 = vld [vmem:[%s1 + $0x8] sm:$0xff]
  %v19 = vld [vmem:[%s1 + $0x10] sm:$0xff]
  %v20 = vld [vmem:[%s1 + $0x18] sm:$0xff]
  %v21 = vld [vmem:[%s1 + $0x20] sm:$0xff]
  %v22 = vld [vmem:[%s1 + $0x28] sm:$0xff]
  %v23 = vld [vmem:[%s1 + $0x30] sm:$0xff]
  %v24 = vld [vmem:[%s1 + $0x38] sm:$0xff]
  %v25 = vld [vmem:[%s2] sm:$0xff]
  %v26 = vld [vmem:[%s2 + $0x8] sm:$0xff]
  %v27 = vld [vmem:[%s2 + $0x10] sm:$0xf]
  %vm28 = vcmask 523264
  %v30 = vsel %vm28, %v14, 0
  %v33 = vsel %vm28, %v15, 0
  %v36 = vsel %vm28, %v16, 0
  %38 = vmatpush.msra.mxu0 0.0
  %39 = vmatpush.msra.mxu0 0.0
  %40 = vmatpush.msra.mxu0 0.0
  %41 = vmatpush.msra.mxu0 0.0
  %42 = vmatpush.msra.mxu0 0.0
  %43 = vmatpush.msra.mxu0 0.0
  %44 = vmatpush.msra.mxu0 0.0
  %45 = vmatpush.msra.mxu0 0.0
  %46 = vmatpush.msra.mxu0 %v24
  %47 = vmatpush.msra.mxu0 %v23
  %48 = vmatpush.msra.mxu0 %v22
  %49 = vmatpush.msra.mxu0 %v21
  %50 = vmatpush.msra.mxu0 %v20
  %51 = vmatpush.msra.mxu0 %v19
  %52 = vmatpush.msra.mxu0 %v18
  %53 = vmatpush.msra.mxu0 %v17
  %54 = vmatmul.f32.gmra.mxu0 %v30
  %v55 = vpop.f32.mrf.mxu0
  %v56 = vadd.f32 %v25, %v55
  %57 = vmatmul.f32.gmra.mxu0 %v33
  %v58 = vpop.f32.mrf.mxu0
  %v59 = vadd.f32 %v26, %v58
  %60 = vmatmul.f32.gmra.mxu0 %v36
  %v61 = vpop.f32.mrf.mxu0
  %v62 = vadd.f32 %v27, %v61
  %63 = vdwg.mxu0
  %64 = vst [vmem:[%s3] sm:$0xff] %v56
  %65 = vst [vmem:[%s3 + $0x8] sm:$0xff] %v59
  %66 = vst [vmem:[%s3 + $0x10] sm:$0xf] %v62
  // Predicated region
  $region14: #{patch_embedding_block.1} parent=0 // pred_check
    _
  $region15: #{patch_embedding_block.1} parent=0 // pred_check_branch
    %68 = sbr.rel (0) target = $region17
  $region16: #{patch_embedding_block.1} parent=0 // pred_region
    _
  $region17: #{patch_embedding_block.1} parent=0 // pred_fallthru
    _
  // Predicated region
  $region18: #{patch_embedding_block.1} parent=0 // pred_check
    _
  $region19: #{patch_embedding_block.1} parent=0 // pred_check_branch
    %70 = sbr.rel (0) target = $region21
  $region20: #{patch_embedding_block.1} parent=0 // pred_region
    _
  $region21: #{patch_embedding_block.1} parent=0 // pred_fallthru
    _

</llo_original>
